<compile_context>
chip_gen: v7x
topology: tpu7x:2x2x1
jax: 0.10.0
libtpu: 0.0.40
codegen_flags: <defaults>
</compile_context>

<pallas_src>
import functools
import math

import jax
import jax.numpy as jnp
from jax.experimental import pallas as pl
from jax.experimental.pallas import tpu as pltpu

LANE = 128        # vreg lane width (last dim)
SUBLANE = 8       # f32 sublane count (second-to-last dim)
_MIB = 1 << 20
_MAX_TILE_B = 512  # 512-row tiles ~85% of HBM roofline vs ~29% at 128 (review)


def _round_up(n: int, m: int) -> int:
    return ((n + m - 1) // m) * m


def _apply_activation(y, name: str):
    act = name.lower()
    if act == "relu":
        return jnp.maximum(y, 0.0)
    if act == "tanh":
        return jnp.tanh(y)
    if act == "sigmoid":
        # exp and the approximate reciprocal both run on the EUP slot,
        # keeping the divide entirely off the VALU path.
        return pl.reciprocal(1.0 + jnp.exp(-y), approx=True)
    if act == "leaky_relu":
        return jnp.where(y > 0.0, y, 0.01 * y)  # nn.LeakyReLU default slope
    if act == "linear":
        return y                                # nn.Identity
    # get_torch_activation falls back to ReLU for unknown names
    return jnp.maximum(y, 0.0)


# ----------------------------------------------------------------------------
# Kernel: the whole MLP fused (matmul + bias + activation per layer), with
# intermediate activations kept resident in VMEM/vregs.
# ----------------------------------------------------------------------------
def _fused_mlp_kernel(*refs, activations, compute_dtype):
    # refs = (x_ref, w0_ref, b0_ref, w1_ref, b1_ref, ..., o_ref)
    x_ref = refs[0]
    o_ref = refs[-1]

    y = x_ref[...].astype(jnp.float32)          # (tile_b, F)
    for li, act in enumerate(activations):
        w_ref = refs[1 + 2 * li]                # (in_dim_l, out_dim_l) compute_dtype
        b_ref = refs[2 + 2 * li]                # (1, out_dim_l) f32
        y = jnp.dot(y.astype(compute_dtype), w_ref[...],
                    preferred_element_type=jnp.float32)   # f32 accumulation
        y = y + b_ref[...].astype(jnp.float32)
        y = _apply_activation(y, act)           # activation math stays f32

    o_ref[...] = y.astype(o_ref.dtype)


# ----------------------------------------------------------------------------
# SequentialModel equivalent
# ----------------------------------------------------------------------------
class SequentialModelPallas:
    """Mirror of mario_torch.SequentialModel forward pass (fused Pallas MLP)."""

    # TODO(synk): save()/load()/set_training_mode() are host-side torch
    # checkpoint / mode utilities with no kernel equivalent; only forward()
    # is implemented.

    def __init__(self, layer_sizes, hidden_activation, output_activation, key,
                 compute_dtype=jnp.bfloat16):
        self.layer_sizes = list(layer_sizes)
        self.hidden_activation = hidden_activation
        self.output_activation = output_activation
        self.compute_dtype = compute_dtype

        n_layers = len(layer_sizes) - 1
        keys = jax.random.split(key, 2 * n_layers)

        self.activations = []     # per-layer activation name
        self.ref_params = []      # (W^T (in,out) f32, b (out,) f32) unpadded
        self.padded_params = []   # (W^T padded -> compute_dtype, b padded f32 (1,out))
        self.padded_dims = []     # (in_dim, out_dim) per layer, as stored

        for i in range(n_layers):
            fan_in = layer_sizes[i]
            fan_out = layer_sizes[i + 1]
            bound = 1.0 / math.sqrt(fan_in)     # PyTorch nn.Linear default init
            w = jax.random.uniform(
                keys[2 * i], (fan_out, fan_in), jnp.float32, -bound, bound)
            b = jax.random.uniform(
                keys[2 * i + 1], (fan_out,), jnp.float32, -bound, bound)
            act = hidden_activation if i < n_layers - 1 else output_activation

            self.activations.append(act)
            self.ref_params.append((w.T, b))

            # Contraction (input) dim is NOT padded to 128: a full-array weight
            # block has no alignment requirement, and padding K only multiplies
            # MXU passes / weight bytes for zero contribution.  The input dim of
            # layer i must equal the (possibly padded) output width of layer i-1
            # so shapes line up inside the kernel.
            in_dim = fan_in if i == 0 else self.padded_dims[i - 1][1]
            # Hidden outputs are padded to a lane multiple (128) so the resident
            # intermediate stays lane-dense; the FINAL layer is kept at its true
            # width (narrow masked store) to avoid 16x output HBM traffic plus
            # an extra XLA slice.  (For very wide hidden layers on v6e/v7x,
            # rounding to 256 would better fill the 2x256^2 MXU.)
            out_dim = fan_out if i == n_layers - 1 else _round_up(fan_out, LANE)

            # NOTE(correctness): padded output lanes of a hidden layer can be
            # nonzero after the activation (e.g. sigmoid(0) = 0.5).  Correctness
            # relies on the NEXT layer's weight rows [fan_in:in_dim] and all
            # padded bias lanes being exactly zero so that garbage is
            # annihilated.  Keep weight-row / bias padding at 0 when editing.
            w_pad = (jnp.zeros((in_dim, out_dim), jnp.float32)
                     .at[:fan_in, :fan_out].set(w.T)).astype(compute_dtype)
            b_pad = (jnp.zeros((1, out_dim), jnp.float32)
                     .at[:, :fan_out].set(b))
            self.padded_params.append((w_pad, b_pad))
            self.padded_dims.append((in_dim, out_dim))

        self._flat_params = []
        for w_pad, b_pad in self.padded_params:
            self._flat_params.append(w_pad)
            self._flat_params.append(b_pad)

        self._forward = jax.jit(self._forward_impl)

    # -- tiling / budgeting helpers -------------------------------------------
    def _choose_tile_b(self, B: int) -> int:
        """Batch tile: 8-aligned, <=512 rows, >=2 balanced steps for big B (v7x)."""
        if B >= 2 * _MAX_TILE_B:
            n_steps = -(-B // _MAX_TILE_B)
            if n_steps % 2:
                n_steps += 1          # even number of parallel steps -> balanced TCs
            return _round_up(-(-B // n_steps), SUBLANE)
        if B >= 256:
            # Split medium batches in two so v7x's second TensorCore isn't idle.
            return _round_up(-(-B // 2), SUBLANE)
        return _round_up(max(B, 1), SUBLANE)

    def _vmem_limit_bytes(self, tile_b: int) -> int:
        """Explicit VMEM budget for the fully-resident-weights design (v7x-safe)."""
        total = 0
        for w_pad, b_pad in self.padded_params:
            total += 2 * w_pad.size * w_pad.dtype.itemsize   # pipeline double-buffer
            total += 2 * b_pad.size * b_pad.dtype.itemsize
        in_dim = self.layer_sizes[0]
        out_dim = self.layer_sizes[-1]
        widest = max(od for _, od in self.padded_dims)
        total += 2 * tile_b * in_dim * 4       # x tile, double-buffered
        total += 2 * tile_b * out_dim * 4      # out tile, double-buffered
        total += 4 * tile_b * widest * 4       # live intermediates / scratch headroom
        total += 2 * _MIB                      # misc headroom
        # Clamp to what even v7x (64 MiB physical VMEM) can grant.
        return int(min(max(total, 4 * _MIB), 64 * _MIB))

    # -- jitted forward over the fused kernel ---------------------------------
    def _forward_impl(self, x, *flat_params):
        B, F = x.shape
        out_dim = self.layer_sizes[-1]
        tile_b = self._choose_tile_b(B)
        grid = (pl.cdiv(B, tile_b),)

        # No wrapper-side padding copy: x is consumed at its true (B, F) shape.
        # F is the full array dim (allowed for a block's last dim); a ragged
        # final batch block is masked by Pallas — garbage rows stay row-local
        # and are never stored.
        in_specs = [pl.BlockSpec((tile_b, F), lambda i: (i, 0))]
        for in_dim_l, out_dim_l in self.padded_dims:
            # Grid-invariant weight/bias blocks (index_map constant).
            # TODO(synk): pipeline_mode=pl.Buffered(1) would halve their VMEM
            # residency for wide layers; left at the default for this tiny demo.
            in_specs.append(pl.BlockSpec((in_dim_l, out_dim_l), lambda i: (0, 0)))
            in_specs.append(pl.BlockSpec((1, out_dim_l), lambda i: (0, 0)))
        out_spec = pl.BlockSpec((tile_b, out_dim), lambda i: (i, 0))

        kernel = functools.partial(
            _fused_mlp_kernel,
            activations=tuple(self.activations),
            compute_dtype=self.compute_dtype,
        )

        return pl.pallas_call(
            kernel,
            out_shape=jax.ShapeDtypeStruct((B, out_dim), jnp.float32),
            grid=grid,
            in_specs=in_specs,
            out_specs=out_spec,
            compiler_params=pltpu.CompilerParams(
                dimension_semantics=("parallel",),
                vmem_limit_bytes=self._vmem_limit_bytes(tile_b),
            ),
        )(x.astype(jnp.float32), *flat_params)

    def __call__(self, x):
        return self._forward(x, *self._flat_params)

    # -- Pure-JAX f32 reference (no Pallas, unpadded) for verification --------
    def reference(self, x):
        y = x.astype(jnp.float32)
        for (w_t, b), act in zip(self.ref_params, self.activations):
            y = jnp.dot(y, w_t) + b
            a = act.lower()
            if a == "relu":
                y = jnp.maximum(y, 0.0)
            elif a == "tanh":
                y = jnp.tanh(y)
            elif a == "sigmoid":
                y = 1.0 / (1.0 + jnp.exp(-y))
            elif a == "leaky_relu":
                y = jnp.where(y > 0.0, y, 0.01 * y)
            elif a == "linear":
                pass
            else:
                y = jnp.maximum(y, 0.0)
        return y


if __name__ == "__main__":
    key = jax.random.PRNGKey(0)
    k_params, k_x = jax.random.split(key)

    # Small MLP consistent with SequentialModel([in, hidden, hidden, out], ...)
    layer_sizes = [32, 64, 64, 8]
    model = SequentialModelPallas(
        layer_sizes,
        hidden_activation="relu",
        output_activation="sigmoid",
        key=k_params,
    )

    batch = 8
    x = jax.random.normal(k_x, (batch, layer_sizes[0]), jnp.float32)

    out = model(x)
    out = jax.block_until_ready(out)

    ref = model.reference(x)
    assert out.shape == (batch, layer_sizes[-1])
    # bf16 weights (f32 accumulation) + approx reciprocal vs. a pure-f32
    # reference: expected precision loss, hence the relaxed tolerance.
    assert jnp.allclose(out, ref, atol=2.5e-2, rtol=2.5e-2), "mismatch vs reference"

    print("KERNEL_OK")
</pallas_src>

<mosaic_0001>
module attributes {stable_mosaic.version = 11 : i64} {
  func.func @_fused_mlp_kernel(%arg0: i32, %arg1: memref<8x32xf32, #tpu.memory_space<vmem>>, %arg2: memref<32x128xbf16, #tpu.memory_space<vmem>>, %arg3: memref<1x128xf32, #tpu.memory_space<vmem>>, %arg4: memref<128x128xbf16, #tpu.memory_space<vmem>>, %arg5: memref<1x128xf32, #tpu.memory_space<vmem>>, %arg6: memref<128x8xbf16, #tpu.memory_space<vmem>>, %arg7: memref<1x8xf32, #tpu.memory_space<vmem>>, %arg8: memref<8x8xf32, #tpu.memory_space<vmem>>) attributes {dimension_semantics = [#tpu.dimension_semantics<parallel>], iteration_bounds = array<i64: 1>, scalar_prefetch = 0 : i64, scratch_operands = 0 : i64, tpu.core_type = #tpu.core_type<tc>, window_params = [{transform_indices = @transform_0, window_bounds = array<i64: 8, 32>}, {pipeline_mode = #tpu.pipeline_mode<synchronous>, transform_indices = @transform_1, window_bounds = array<i64: 32, 128>}, {pipeline_mode = #tpu.pipeline_mode<synchronous>, transform_indices = @transform_2, window_bounds = array<i64: 1, 128>}, {pipeline_mode = #tpu.pipeline_mode<synchronous>, transform_indices = @transform_3, window_bounds = array<i64: 128, 128>}, {pipeline_mode = #tpu.pipeline_mode<synchronous>, transform_indices = @transform_4, window_bounds = array<i64: 1, 128>}, {pipeline_mode = #tpu.pipeline_mode<synchronous>, transform_indices = @transform_5, window_bounds = array<i64: 128, 8>}, {pipeline_mode = #tpu.pipeline_mode<synchronous>, transform_indices = @transform_6, window_bounds = array<i64: 1, 8>}, {transform_indices = @transform_7, window_bounds = array<i64: 8, 8>}]} {
    %c0 = arith.constant 0 : index
    %c0_0 = arith.constant 0 : index
    %0 = vector.load %arg1[%c0, %c0_0] : memref<8x32xf32, #tpu.memory_space<vmem>>, vector<8x32xf32>
    %1 = arith.truncf %0 : vector<8x32xf32> to vector<8x32xbf16>
    %c0_1 = arith.constant 0 : index
    %c0_2 = arith.constant 0 : index
    %2 = vector.load %arg2[%c0_1, %c0_2] : memref<32x128xbf16, #tpu.memory_space<vmem>>, vector<32x128xbf16>
    %cst = arith.constant dense<0.000000e+00> : vector<8x128xf32>
    %3 = tpu.matmul %1, %2, %cst {dimension_numbers = #tpu.dot_dimension_numbers<[1], [0], [0], [1], [0, 0, 1, 1], [], []>} : vector<8x32xbf16>, vector<32x128xbf16>, vector<8x128xf32> -> vector<8x128xf32>
    %c0_3 = arith.constant 0 : index
    %c0_4 = arith.constant 0 : index
    %4 = vector.load %arg3[%c0_3, %c0_4] : memref<1x128xf32, #tpu.memory_space<vmem>>, vector<1x128xf32>
    %5 = vector.broadcast %4 : vector<1x128xf32> to vector<8x128xf32>
    %6 = arith.addf %3, %5 : vector<8x128xf32>
    %cst_5 = arith.constant 0.000000e+00 : f32
    %7 = vector.broadcast %cst_5 : f32 to vector<8x128xf32>
    %8 = arith.maximumf %6, %7 : vector<8x128xf32>
    %9 = arith.truncf %8 : vector<8x128xf32> to vector<8x128xbf16>
    %c0_6 = arith.constant 0 : index
    %c0_7 = arith.constant 0 : index
    %10 = vector.load %arg4[%c0_6, %c0_7] : memref<128x128xbf16, #tpu.memory_space<vmem>>, vector<128x128xbf16>
    %cst_8 = arith.constant dense<0.000000e+00> : vector<8x128xf32>
    %11 = tpu.matmul %9, %10, %cst_8 {dimension_numbers = #tpu.dot_dimension_numbers<[1], [0], [0], [1], [0, 0, 1, 1], [], []>} : vector<8x128xbf16>, vector<128x128xbf16>, vector<8x128xf32> -> vector<8x128xf32>
    %c0_9 = arith.constant 0 : index
    %c0_10 = arith.constant 0 : index
    %12 = vector.load %arg5[%c0_9, %c0_10] : memref<1x128xf32, #tpu.memory_space<vmem>>, vector<1x128xf32>
    %13 = vector.broadcast %12 : vector<1x128xf32> to vector<8x128xf32>
    %14 = arith.addf %11, %13 : vector<8x128xf32>
    %cst_11 = arith.constant 0.000000e+00 : f32
    %15 = vector.broadcast %cst_11 : f32 to vector<8x128xf32>
    %16 = arith.maximumf %14, %15 : vector<8x128xf32>
    %17 = arith.truncf %16 : vector<8x128xf32> to vector<8x128xbf16>
    %c0_12 = arith.constant 0 : index
    %c0_13 = arith.constant 0 : index
    %18 = vector.load %arg6[%c0_12, %c0_13] : memref<128x8xbf16, #tpu.memory_space<vmem>>, vector<128x8xbf16>
    %cst_14 = arith.constant dense<0.000000e+00> : vector<8x8xf32>
    %19 = tpu.matmul %17, %18, %cst_14 {dimension_numbers = #tpu.dot_dimension_numbers<[1], [0], [0], [1], [0, 0, 1, 1], [], []>} : vector<8x128xbf16>, vector<128x8xbf16>, vector<8x8xf32> -> vector<8x8xf32>
    %c0_15 = arith.constant 0 : index
    %c0_16 = arith.constant 0 : index
    %20 = vector.load %arg7[%c0_15, %c0_16] : memref<1x8xf32, #tpu.memory_space<vmem>>, vector<1x8xf32>
    %21 = vector.broadcast %20 : vector<1x8xf32> to vector<8x8xf32>
    %22 = arith.addf %19, %21 : vector<8x8xf32>
    %cst_17 = arith.constant 0.000000e+00 : f32
    %23 = vector.broadcast %cst_17 : f32 to vector<8x8xf32>
    %24 = arith.subf %23, %22 : vector<8x8xf32>
    %25 = math.exp %24 : vector<8x8xf32>
    %cst_18 = arith.constant 1.000000e+00 : f32
    %26 = vector.broadcast %cst_18 : f32 to vector<8x8xf32>
    %27 = arith.addf %26, %25 : vector<8x8xf32>
    %28 = tpu.reciprocal %27 {approx = true} : vector<8x8xf32> -> vector<8x8xf32>
    %c0_19 = arith.constant 0 : index
    %c0_20 = arith.constant 0 : index
    %29 = vector.load %arg8[%c0_19, %c0_20] : memref<8x8xf32, #tpu.memory_space<vmem>>, vector<8x8xf32>
    tpu.vector_store %arg8[%c0_19, %c0_20], %28 {strides = array<i32>} : memref<8x8xf32, #tpu.memory_space<vmem>>, vector<8x8xf32>,
    return
  }
  func.func @transform_0(%arg0: i32) -> (i32, i32) {
    %c0_i32 = arith.constant 0 : i32
    %c0_i32_0 = arith.constant 0 : i32
    return %arg0, %c0_i32 : i32, i32
  }
  func.func @transform_1(%arg0: i32) -> (i32, i32) {
    %c0_i32 = arith.constant 0 : i32
    %c0_i32_0 = arith.constant 0 : i32
    %c0_i32_1 = arith.constant 0 : i32
    return %c0_i32, %c0_i32_0 : i32, i32
  }
  func.func @transform_2(%arg0: i32) -> (i32, i32) {
    %c0_i32 = arith.constant 0 : i32
    %c0_i32_0 = arith.constant 0 : i32
    %c0_i32_1 = arith.constant 0 : i32
    return %c0_i32, %c0_i32_0 : i32, i32
  }
  func.func @transform_3(%arg0: i32) -> (i32, i32) {
    %c0_i32 = arith.constant 0 : i32
    %c0_i32_0 = arith.constant 0 : i32
    %c0_i32_1 = arith.constant 0 : i32
    return %c0_i32, %c0_i32_0 : i32, i32
  }
  func.func @transform_4(%arg0: i32) -> (i32, i32) {
    %c0_i32 = arith.constant 0 : i32
    %c0_i32_0 = arith.constant 0 : i32
    %c0_i32_1 = arith.constant 0 : i32
    return %c0_i32, %c0_i32_0 : i32, i32
  }
  func.func @transform_5(%arg0: i32) -> (i32, i32) {
    %c0_i32 = arith.constant 0 : i32
    %c0_i32_0 = arith.constant 0 : i32
    %c0_i32_1 = arith.constant 0 : i32
    return %c0_i32, %c0_i32_0 : i32, i32
  }
  func.func @transform_6(%arg0: i32) -> (i32, i32) {
    %c0_i32 = arith.constant 0 : i32
    %c0_i32_0 = arith.constant 0 : i32
    %c0_i32_1 = arith.constant 0 : i32
    return %c0_i32, %c0_i32_0 : i32, i32
  }
  func.func @transform_7(%arg0: i32) -> (i32, i32) {
    %c0_i32 = arith.constant 0 : i32
    %c0_i32_0 = arith.constant 0 : i32
    return %arg0, %c0_i32 : i32, i32
  }
}

</mosaic_0001>

<llo_original>
// kernel: _forward_impl.1
$region0: #{_forward_impl.1}
  #allocation0 [shape = 'u32[]', space=smem, size = 0x4, offset = 0x4, fixed_abs, tag = 'smem constant byte address 0x4 - core index']
  #allocation1 [shape = 'u32[144,128]{1,0:T(1,128)}', space=vmem, size = 0x12000, scoped, tag = 'internal scratch']
  %s0 = inlined_call_operand.vmem [shape: f32[8,32], index: 0, kind: input, shape index: {}]
  %s1 = inlined_call_operand.hbm [shape: bf16[32,128], index: 1, kind: input, shape index: {}]
  %s2 = inlined_call_operand.vmem [shape: f32[1,128], index: 2, kind: input, shape index: {}]
  %s3 = inlined_call_operand.vmem [shape: bf16[128,128], index: 3, kind: input, shape index: {}]
  %s4 = inlined_call_operand.vmem [shape: f32[1,128], index: 4, kind: input, shape index: {}]
  %s5 = inlined_call_operand.vmem [shape: bf16[128,8], index: 5, kind: input, shape index: {}]
  %s6 = inlined_call_operand.vmem [shape: f32[1,8], index: 6, kind: input, shape index: {}]
  %s7 = inlined_call_operand.hbm [shape: f32[8,8], index: 7, kind: output, shape index: {}]
  %s8 = sld [smem:[#allocation0]]
  $region42: #{_forward_impl.1} parent=0
    _
  %s10 = ssub.s32 1, %s8
  %s11 = scalar_select 0, %s10, %s8
  $region1: #{_forward_impl.1} parent=0
    #allocation2 [shape = 'u8[8192]{0}', space=vmem, size = 0x2000, scoped, tag = 'input window, operand 1, single buffered']
    #allocation3 [shape = 's32[1]{0}', space=sflag, size = 0x4, scoped, tag = 'scoped memory for _forward_impl.1']
    #allocation4 [shape = 's32[1]{0}', space=sflag, size = 0x4, scoped, tag = 'scoped memory for _forward_impl.1']
    #allocation5 [shape = 'u8[4096]{0}', space=vmem, size = 0x1000, scoped, tag = 'output window, operand 0, single buffered']
    %12 = vsyncpa [#allocation3], 0
    %13 = vsyncpa [#allocation4], 0
    // Predicated region
    $region2: #{_forward_impl.1} parent=1 // pred_check
      _
    $region3: #{_forward_impl.1} parent=1 // pred_check_branch
      %15 = sbr.rel (0) target = $region5
    $region4: #{_forward_impl.1} parent=1 // pred_region
      _
    $region5: #{_forward_impl.1} parent=1 // pred_fallthru
      _
    // Predicated region
    $region6: #{_forward_impl.1} parent=1 // pred_check
      _
    $region7: #{_forward_impl.1} parent=1 // pred_check_branch
      %17 = sbr.rel (0) target = $region9
    $region8: #{_forward_impl.1} parent=1 // pred_region
      %s19 = ssub.s32 256, 256
      %20 = vsyncadd [#allocation3], %s19
      %s21 = sshll.u32 [#allocation2], 4
      %s22 = int_to_ptr.vmem [resolvable:$true] %s21
      %27 = dma.hbm_to_vmem [thread:$0]  %s1, 256, %s22, [#allocation3], 64, 64, 4
    $region9: #{_forward_impl.1} parent=1 // pred_fallthru
      _
    // Predicated region
    $region10: #{_forward_impl.1} parent=1 // pred_check
      _
    $region11: #{_forward_impl.1} parent=1 // pred_check_branch
      %29 = sbr.rel (0) target = $region13
    $region12: #{_forward_impl.1} parent=1 // pred_region
      _
    $region13: #{_forward_impl.1} parent=1 // pred_fallthru
      _
    // Predicated region
    $region14: #{_forward_impl.1} parent=1 // pred_check
      _
    $region15: #{_forward_impl.1} parent=1 // pred_check_branch
      %31 = sbr.rel (0) target = $region17
    $region16: #{_forward_impl.1} parent=1 // pred_region
      _
    $region17: #{_forward_impl.1} parent=1 // pred_fallthru
      _
    // Predicated region
    $region18: #{_forward_impl.1} parent=1 // pred_check
      _
    $region19: #{_forward_impl.1} parent=1 // pred_check_branch
      %33 = sbr.rel (0) target = $region21
    $region20: #{_forward_impl.1} parent=1 // pred_region
      _
    $region21: #{_forward_impl.1} parent=1 // pred_fallthru
      _
    // Predicated region
    $region22: #{_forward_impl.1} parent=1 // pred_check
      _
    $region23: #{_forward_impl.1} parent=1 // pred_check_branch
      %35 = sbr.rel (0) target = $region25
    $region24: #{_forward_impl.1} parent=1 // pred_region
      _
    $region25: #{_forward_impl.1} parent=1 // pred_fallthru
      _
    // Predicated region
    $region26: #{_forward_impl.1} parent=1 // pred_check
      _
    $region27: #{_forward_impl.1} parent=1 // pred_check_branch
      %37 = sbr.rel (0) target = $region29
    $region28: #{_forward_impl.1} parent=1 // pred_region
      _
    $region29: #{_forward_impl.1} parent=1 // pred_fallthru
      _
    // Predicated region
    $region30: #{_forward_impl.1} parent=1 // pred_check
      _
    $region31: #{_forward_impl.1} parent=1 // pred_check_branch
      %39 = sbr.rel (0) target = $region33
    $region32: #{_forward_impl.1} parent=1 // pred_region
      %40 = dma.done [#allocation3], 256
    $region33: #{_forward_impl.1} parent=1 // pred_fallthru
      _
    %v42 = vld [vmem:[%s0] sm:$0xff]
    %v43 = vpack.c.bf16 %v42, %v42
    %v44 = vld [vmem:[#allocation2] sm:$0xf]
    %v45 = vld [vmem:[#allocation2 + $0x4] sm:$0xf]
    %v46 = vld [vmem:[#allocation2 + $0x8] sm:$0xf]
    %v47 = vld [vmem:[#allocation2 + $0xc] sm:$0xf]
    %v48 = vld [vmem:[%s2] sm:$0x1]
    %v50 = vlaneseq
    %v51 = vshrl.u32 %v50, 7
    %v52 = vsub.s32 0, %v51
    %v53 = vrot.slane %v48, %v52
    %v59 = vunpack.c.l.b16 %v44
    %v60 = vunpack.c.l.b16 %v45
    %v61 = vunpack.c.l.b16 %v46
    %v62 = vunpack.c.l.b16 %v47
    %v63 = vpack.c.b16 %v60, %v59
    %v64 = vpack.c.b16 %v62, %v61
    %vm67 = vcmask 261120
    %v69 = vsel %vm67, %v43, 0
    %71 = vmatprep.subr.bf16.mxu0 0
    %72 = vmatpush1.bf16.msra.mxu0 %v63
    %73 = vmatprep.subr.bf16.mxu0 0
    %74 = vmatpush1.bf16.msra.mxu0 %v64
    %75 = vmatprep.subr.bf16.mxu0 0
    %76 = vmatpush1.bf16.msra.mxu0 0
    %77 = vmatprep.subr.bf16.mxu0 0
    %78 = vmatpush1.bf16.msra.mxu0 0
    %79 = vmatprep.subr.bf16.mxu0 0
    %80 = vmatpush1.bf16.msra.mxu0 0
    %81 = vmatprep.subr.bf16.mxu0 0
    %82 = vmatpush1.bf16.msra.mxu0 0
    %83 = vmatprep.subr.bf16.mxu0 0
    %84 = vmatpush1.bf16.msra.mxu0 0
    %85 = vmatprep.subr.bf16.mxu0 0
    %86 = vmatpush1.bf16.msra.mxu0 0
    %87 = vmatprep.subr.bf16.mxu0 0
    %88 = vmatpush1.bf16.msra.mxu0 0
    %89 = vmatprep.subr.bf16.mxu0 0
    %90 = vmatpush1.bf16.msra.mxu0 0
    %91 = vmatprep.subr.bf16.mxu0 0
    %92 = vmatpush1.bf16.msra.mxu0 0
    %93 = vmatprep.subr.bf16.mxu0 0
    %94 = vmatpush1.bf16.msra.mxu0 0
    %95 = vmatprep.subr.bf16.mxu0 0
    %96 = vmatpush1.bf16.msra.mxu0 0
    %97 = vmatprep.subr.bf16.mxu0 0
    %98 = vmatpush1.bf16.msra.mxu0 0
    %99 = vmatprep.subr.bf16.mxu0 0
    %100 = vmatpush1.bf16.msra.mxu0 0
    %101 = vmatprep.subr.bf16.mxu0 0
    %102 = vmatpush1.bf16.msra.mxu0 0
    %103 = vmatprep.mubr.bf16.mxu0 0
    %104 = vmatmul.mubr.bf16.gmra.mrb[0].mxu0 %v69
    %v105 = vpop.f32.mrb[0].mxu0
    %v106 = vadd.f32 %v53, %v105
    %v107 = vpop.f32.mrb[0].mxu0
    %v108 = vpop.f32.mrb[0].mxu0
    %v109 = vpop.f32.mrb[0].mxu0
    %110 = vdwg.mxu0
    %v111 = vmax.f32 %v106, 0.0
    %v112 = vpack.c.bf16 %v111, %v111
    %v113 = vld [vmem:[%s3] sm:$0xf]
    %v114 = vld [vmem:[%s3 + $0x4] sm:$0xf]
    %v115 = vld [vmem:[%s3 + $0x8] sm:$0xf]
    %v116 = vld [vmem:[%s3 + $0xc] sm:$0xf]
    %v117 = vld [vmem:[%s3 + $0x10] sm:$0xf]
    %v118 = vld [vmem:[%s3 + $0x14] sm:$0xf]
    %v119 = vld [vmem:[%s3 + $0x18] sm:$0xf]
    %v120 = vld [vmem:[%s3 + $0x1c] sm:$0xf]
    %v121 = vld [vmem:[%s3 + $0x20] sm:$0xf]
    %v122 = vld [vmem:[%s3 + $0x24] sm:$0xf]
    %v123 = vld [vmem:[%s3 + $0x28] sm:$0xf]
    %v124 = vld [vmem:[%s3 + $0x2c] sm:$0xf]
    %v125 = vld [vmem:[%s3 + $0x30] sm:$0xf]
    %v126 = vld [vmem:[%s3 + $0x34] sm:$0xf]
    %v127 = vld [vmem:[%s3 + $0x38] sm:$0xf]
    %v128 = vld [vmem:[%s3 + $0x3c] sm:$0xf]
    %v129 = vld [vmem:[%s4] sm:$0x1]
    %v131 = vlaneseq
    %v132 = vshrl.u32 %v131, 7
    %v133 = vsub.s32 0, %v132
    %v134 = vrot.slane %v129, %v133
    %v152 = vunpack.c.l.b16 %v113
    %v153 = vunpack.c.l.b16 %v114
    %v154 = vunpack.c.l.b16 %v115
    %v155 = vunpack.c.l.b16 %v116
    %v156 = vunpack.c.l.b16 %v117
    %v157 = vunpack.c.l.b16 %v118
    %v158 = vunpack.c.l.b16 %v119
    %v159 = vunpack.c.l.b16 %v120
    %v160 = vunpack.c.l.b16 %v121
    %v161 = vunpack.c.l.b16 %v122
    %v162 = vunpack.c.l.b16 %v123
    %v163 = vunpack.c.l.b16 %v124
    %v164 = vunpack.c.l.b16 %v125
    %v165 = vunpack.c.l.b16 %v126
    %v166 = vunpack.c.l.b16 %v127
    %v167 = vunpack.c.l.b16 %v128
    %v168 = vpack.c.b16 %v153, %v152
    %v169 = vpack.c.b16 %v155, %v154
    %v170 = vpack.c.b16 %v157, %v156
    %v171 = vpack.c.b16 %v159, %v158
    %v172 = vpack.c.b16 %v161, %v160
    %v173 = vpack.c.b16 %v163, %v162
    %v174 = vpack.c.b16 %v165, %v164
    %v175 = vpack.c.b16 %v167, %v166
    %184 = vmatprep.subr.bf16.mxu0 0
    %185 = vmatpush1.bf16.msra.mxu0 %v168
    %186 = vmatprep.subr.bf16.mxu0 0
    %187 = vmatpush1.bf16.msra.mxu0 %v169
    %188 = vmatprep.subr.bf16.mxu0 0
    %189 = vmatpush1.bf16.msra.mxu0 %v170
    %190 = vmatprep.subr.bf16.mxu0 0
    %191 = vmatpush1.bf16.msra.mxu0 %v171
    %192 = vmatprep.subr.bf16.mxu0 0
    %193 = vmatpush1.bf16.msra.mxu0 %v172
    %194 = vmatprep.subr.bf16.mxu0 0
    %195 = vmatpush1.bf16.msra.mxu0 %v173
    %196 = vmatprep.subr.bf16.mxu0 0
    %197 = vmatpush1.bf16.msra.mxu0 %v174
    %198 = vmatprep.subr.bf16.mxu0 0
    %199 = vmatpush1.bf16.msra.mxu0 %v175
    %200 = vmatprep.subr.bf16.mxu0 0
    %201 = vmatpush1.bf16.msra.mxu0 0
    %202 = vmatprep.subr.bf16.mxu0 0
    %203 = vmatpush1.bf16.msra.mxu0 0
    %204 = vmatprep.subr.bf16.mxu0 0
    %205 = vmatpush1.bf16.msra.mxu0 0
    %206 = vmatprep.subr.bf16.mxu0 0
    %207 = vmatpush1.bf16.msra.mxu0 0
    %208 = vmatprep.subr.bf16.mxu0 0
    %209 = vmatpush1.bf16.msra.mxu0 0
    %210 = vmatprep.subr.bf16.mxu0 0
    %211 = vmatpush1.bf16.msra.mxu0 0
    %212 = vmatprep.subr.bf16.mxu0 0
    %213 = vmatpush1.bf16.msra.mxu0 0
    %214 = vmatprep.subr.bf16.mxu0 0
    %215 = vmatpush1.bf16.msra.mxu0 0
    %216 = vmatprep.mubr.bf16.mxu0 0
    %217 = vmatmul.mubr.bf16.gmra.mrb[0].mxu0 %v112
    %v218 = vpop.f32.mrb[0].mxu0
    %v219 = vadd.f32 %v134, %v218
    %v220 = vpop.f32.mrb[0].mxu0
    %v221 = vpop.f32.mrb[0].mxu0
    %v222 = vpop.f32.mrb[0].mxu0
    %223 = vdwg.mxu0
    %v224 = vmax.f32 %v219, 0.0
    %v225 = vpack.c.bf16 %v224, %v224
    %v226 = vld [vmem:[%s5] sm:$0xf]
    %v227 = vld [vmem:[%s5 + $0x4] sm:$0xf]
    %v228 = vld [vmem:[%s5 + $0x8] sm:$0xf]
    %v229 = vld [vmem:[%s5 + $0xc] sm:$0xf]
    %v230 = vld [vmem:[%s5 + $0x10] sm:$0xf]
    %v231 = vld [vmem:[%s5 + $0x14] sm:$0xf]
    %v232 = vld [vmem:[%s5 + $0x18] sm:$0xf]
    %v233 = vld [vmem:[%s5 + $0x1c] sm:$0xf]
    %v234 = vld [vmem:[%s5 + $0x20] sm:$0xf]
    %v235 = vld [vmem:[%s5 + $0x24] sm:$0xf]
    %v236 = vld [vmem:[%s5 + $0x28] sm:$0xf]
    %v237 = vld [vmem:[%s5 + $0x2c] sm:$0xf]
    %v238 = vld [vmem:[%s5 + $0x30] sm:$0xf]
    %v239 = vld [vmem:[%s5 + $0x34] sm:$0xf]
    %v240 = vld [vmem:[%s5 + $0x38] sm:$0xf]
    %v241 = vld [vmem:[%s5 + $0x3c] sm:$0xf]
    %v242 = vld [vmem:[%s6] sm:$0x1]
    %v244 = vlaneseq
    %v245 = vshrl.u32 %v244, 7
    %v246 = vsub.s32 0, %v245
    %v247 = vrot.slane %v242, %v246
    %v265 = vunpack.c.l.b16 %v226
    %v266 = vunpack.c.l.b16 %v227
    %v267 = vunpack.c.l.b16 %v228
    %v268 = vunpack.c.l.b16 %v229
    %v269 = vunpack.c.l.b16 %v230
    %v270 = vunpack.c.l.b16 %v231
    %v271 = vunpack.c.l.b16 %v232
    %v272 = vunpack.c.l.b16 %v233
    %v273 = vunpack.c.l.b16 %v234
    %v274 = vunpack.c.l.b16 %v235
    %v275 = vunpack.c.l.b16 %v236
    %v276 = vunpack.c.l.b16 %v237
    %v277 = vunpack.c.l.b16 %v238
    %v278 = vunpack.c.l.b16 %v239
    %v279 = vunpack.c.l.b16 %v240
    %v280 = vunpack.c.l.b16 %v241
    %v281 = vpack.c.b16 %v266, %v265
    %v282 = vpack.c.b16 %v268, %v267
    %v283 = vpack.c.b16 %v270, %v269
    %v284 = vpack.c.b16 %v272, %v271
    %v285 = vpack.c.b16 %v274, %v273
    %v286 = vpack.c.b16 %v276, %v275
    %v287 = vpack.c.b16 %v278, %v277
    %v288 = vpack.c.b16 %v280, %v279
    %297 = vmatprep.subr.bf16.mxu0 0
    %298 = vmatpush1.bf16.msra.mxu0 %v281
    %299 = vmatprep.subr.bf16.mxu0 0
    %300 = vmatpush1.bf16.msra.mxu0 %v282
    %301 = vmatprep.subr.bf16.mxu0 0
    %302 = vmatpush1.bf16.msra.mxu0 %v283
    %303 = vmatprep.subr.bf16.mxu0 0
    %304 = vmatpush1.bf16.msra.mxu0 %v284
    %305 = vmatprep.subr.bf16.mxu0 0
    %306 = vmatpush1.bf16.msra.mxu0 %v285
    %307 = vmatprep.subr.bf16.mxu0 0
    %308 = vmatpush1.bf16.msra.mxu0 %v286
    %309 = vmatprep.subr.bf16.mxu0 0
    %310 = vmatpush1.bf16.msra.mxu0 %v287
    %311 = vmatprep.subr.bf16.mxu0 0
    %312 = vmatpush1.bf16.msra.mxu0 %v288
    %313 = vmatprep.subr.bf16.mxu0 0
    %314 = vmatpush1.bf16.msra.mxu0 0
    %315 = vmatprep.subr.bf16.mxu0 0
    %316 = vmatpush1.bf16.msra.mxu0 0
    %317 = vmatprep.subr.bf16.mxu0 0
    %318 = vmatpush1.bf16.msra.mxu0 0
    %319 = vmatprep.subr.bf16.mxu0 0
    %320 = vmatpush1.bf16.msra.mxu0 0
    %321 = vmatprep.subr.bf16.mxu0 0
    %322 = vmatpush1.bf16.msra.mxu0 0
    %323 = vmatprep.subr.bf16.mxu0 0
    %324 = vmatpush1.bf16.msra.mxu0 0
    %325 = vmatprep.subr.bf16.mxu0 0
    %326 = vmatpush1.bf16.msra.mxu0 0
    %327 = vmatprep.subr.bf16.mxu0 0
    %328 = vmatpush1.bf16.msra.mxu0 0
    %329 = vmatprep.mubr.bf16.mxu0 0
    %330 = vmatmul.mubr.bf16.gmra.mrb[0].mxu0 %v225
    %v331 = vpop.f32.mrb[0].mxu0
    %v332 = vadd.f32 %v247, %v331
    %v333 = vpop.f32.mrb[0].mxu0
    %v334 = vpop.f32.mrb[0].mxu0
    %v335 = vpop.f32.mrb[0].mxu0
    %336 = vdwg.mxu0
    %v337 = vsub.f32 0.0, %v332
    %v338 = vmul.f32 %v337, 1.442695
    %v339 = vpow.pop %v338
    %v340 = vadd.f32 %v339, 1.0
    %v341 = vrcp.pop %v340
    %vm342 = vcmask 64512
    %343 = vst.msk [vmem:[#allocation5] sm:$0xff] %vm342, %v341
    // Predicated region
    $region34: #{_forward_impl.1} parent=1 // pred_check
      _
    $region35: #{_forward_impl.1} parent=1 // pred_check_branch
      %345 = sbr.rel (0) target = $region37
    $region36: #{_forward_impl.1} parent=1 // pred_region
      %s347 = ssub.s32 128, 128
      %348 = vsyncadd [#allocation4], %s347
      %s350 = sshll.u32 [#allocation5], 4
      %s351 = int_to_ptr.vmem [resolvable:$true] %s350
      %353 = dma.vmem_to_hbm [thread:$0]  %s351, 128, %s7, [#allocation4]
    $region37: #{_forward_impl.1} parent=1 // pred_fallthru
      _
    // Predicated region
    $region38: #{_forward_impl.1} parent=1 // pred_check
      _
    $region39: #{_forward_impl.1} parent=1 // pred_check_branch
      %355 = sbr.rel (0) target = $region41
    $region40: #{_forward_impl.1} parent=1 // pred_region
      %356 = dma.done [#allocation4], 128
    $region41: #{_forward_impl.1} parent=1 // pred_fallthru
      _
    %357 = vsyncpa [#allocation3], 1
    %358 = vsyncpa [#allocation4], 1

</llo_original>
